<compile_context>
chip_gen: v7x
topology: tpu7x:2x2x1
jax: 0.10.0
libtpu: 0.0.40
codegen_flags: <defaults>
</compile_context>

<pallas_src>
import jax
import jax.numpy as jnp
from jax.experimental import pallas as pl
from jax.experimental.pallas import tpu as pltpu


def _subdecoder_kernel(xcol_ref, wconv_ref, bconv_ref, whead_ref, bhead_ref,
                       out_ref):
    # xcol_ref : (9C, P) bf16   full 3x3 im2col; P = N*H*W on the lane axis
    # wconv_ref: (C, 9C) bf16   BN-folded 3x3 conv weights
    # bconv_ref: (C, 1)  f32    folded conv + BN bias (sublane-indexed)
    # whead_ref: (3, C)  bf16   [region, edge, distance] 1x1 head weights
    # bhead_ref: (3, 1)  f32    head biases
    # out_ref  : (3, P)  f32    fused, lane-dense head output
    acc = jnp.dot(wconv_ref[...], xcol_ref[...],
                  preferred_element_type=jnp.float32)          # (C, P), one K=9C push
    acc = jnp.maximum(acc + bconv_ref[...], 0.0)               # bias + ReLU, f32 VPU
    heads = jnp.dot(whead_ref[...], acc.astype(jnp.bfloat16),
                    preferred_element_type=jnp.float32)        # (3, P), one K=C push
    out_ref[...] = heads + bhead_ref[...]                      # lane-dense full stores


def subdecoder_pallas(x_nchw, folded_params, pre_result=None):
    """Runs SubDecoder.forward. x_nchw: (N, C, H, W) float32."""
    N, C, H, W = x_nchw.shape
    P = N * H * W
    wconv, bconv, whead, bhead = folded_params

    # Wrapper prep (XLA fuses pad + im2col + transpose + bf16 cast):
    # zero-pad the 1-px halo and fold all 9 taps into the row axis so the kernel
    # is a single 2-D MXU contraction with the spatial/batch extent on lanes.
    xpad = jnp.pad(x_nchw, ((0, 0), (0, 0), (1, 1), (1, 1)))
    taps = [xpad[:, :, dy:dy + H, dx:dx + W]
            for dy in range(3) for dx in range(3)]               # 9 x (N, C, H, W)
    xcol = jnp.stack(taps, axis=0)                               # (9, N, C, H, W)
    xcol = jnp.transpose(xcol, (0, 2, 1, 3, 4)
                         ).reshape(9 * C, P).astype(jnp.bfloat16)  # (9C, N*H*W)

    heads = pl.pallas_call(
        _subdecoder_kernel,
        out_shape=jax.ShapeDtypeStruct((3, P), jnp.float32),
        grid=(1,),                                   # single step: N folded into lanes
        in_specs=[
            pl.BlockSpec((9 * C, P), lambda i: (0, 0)),
            pl.BlockSpec((C, 9 * C), lambda i: (0, 0)),
            pl.BlockSpec((C, 1), lambda i: (0, 0)),
            pl.BlockSpec((3, C), lambda i: (0, 0)),
            pl.BlockSpec((3, 1), lambda i: (0, 0)),
        ],
        out_specs=pl.BlockSpec((3, P), lambda i: (0, 0)),
        compiler_params=pltpu.CompilerParams(
            dimension_semantics=("arbitrary",)),
    )(xcol, wconv, bconv, whead, bhead)

    heads = heads.reshape(3, N, H, W)
    region = heads[0][:, None]                                   # (N, 1, H, W)
    edge = heads[1][:, None]
    dist = heads[2][:, None]

    if pre_result is not None:
        # TODO(synk): fuse the bilinear-2x upsample + add into the kernel epilogue;
        # kept as wrapper glue. jax.image.resize('bilinear') uses half-pixel
        # semantics, matching F.interpolate(mode='bilinear', align_corners=False).
        def up2(p):
            n, c, h, w = p.shape
            return jax.image.resize(p, (n, c, 2 * h, 2 * w), method='bilinear')
        region = region + up2(pre_result[0])
        edge = edge + up2(pre_result[1])
        dist = dist + up2(pre_result[2])
    return region, edge, dist


def init_raw_params(key, C):
    """Deterministic synthetic parameters, PyTorch layouts."""
    ks = jax.random.split(key, 8)
    w_conv = jax.random.normal(ks[0], (C, C, 3, 3), jnp.float32) * 0.1   # Conv2d(C,C,3)
    b_conv = jax.random.normal(ks[1], (C,), jnp.float32) * 0.1
    gamma = jnp.ones((C,), jnp.float32)            # BatchNorm2d affine + running stats
    beta = jnp.zeros((C,), jnp.float32)
    r_mean = jnp.zeros((C,), jnp.float32)
    r_var = jnp.ones((C,), jnp.float32)
    eps = 1e-5
    w_r = jax.random.normal(ks[2], (1, C, 1, 1), jnp.float32) * 0.1      # region_output
    b_r = jax.random.normal(ks[3], (1,), jnp.float32) * 0.1
    w_e = jax.random.normal(ks[4], (1, C, 1, 1), jnp.float32) * 0.1      # edge_output
    b_e = jax.random.normal(ks[5], (1,), jnp.float32) * 0.1
    w_d = jax.random.normal(ks[6], (1, C, 1, 1), jnp.float32) * 0.1      # distance_output
    b_d = jax.random.normal(ks[7], (1,), jnp.float32) * 0.1
    return dict(w_conv=w_conv, b_conv=b_conv, gamma=gamma, beta=beta,
                r_mean=r_mean, r_var=r_var, eps=eps,
                w_r=w_r, b_r=b_r, w_e=w_e, b_e=b_e, w_d=w_d, b_d=b_d)


def fold_params(p):
    """Fold BN (inference mode) into the 3x3 conv; repack for the kernel layout."""
    C = p['w_conv'].shape[0]
    scale = p['gamma'] / jnp.sqrt(p['r_var'] + p['eps'])                   # (C,)
    # torch (Cout, Cin, kh, kw) * scale[cout] -> (Cout, kh, kw, Cin) -> (Cout, 9*Cin)
    w = p['w_conv'] * scale[:, None, None, None]
    wconv = jnp.transpose(w, (0, 2, 3, 1)).reshape(C, 9 * C).astype(jnp.bfloat16)
    bconv = (((p['b_conv'] - p['r_mean']) * scale + p['beta'])
             .reshape(C, 1).astype(jnp.float32))                           # (C, 1)
    whead = jnp.stack([p['w_r'][0, :, 0, 0], p['w_e'][0, :, 0, 0],
                       p['w_d'][0, :, 0, 0]], axis=0).astype(jnp.bfloat16)  # (3, C)
    bhead = jnp.stack([p['b_r'][0], p['b_e'][0],
                       p['b_d'][0]]).reshape(3, 1).astype(jnp.float32)      # (3, 1)
    return wconv, bconv, whead, bhead


def reference_jax(x_nchw, p):
    """Plain-JAX f32 reference of the PyTorch forward (pre_result=None)."""
    out = jax.lax.conv_general_dilated(
        x_nchw, p['w_conv'], (1, 1), 'SAME',
        dimension_numbers=('NCHW', 'OIHW', 'NCHW')) + p['b_conv'][None, :, None, None]
    out = ((out - p['r_mean'][None, :, None, None])
           / jnp.sqrt(p['r_var'] + p['eps'])[None, :, None, None]
           * p['gamma'][None, :, None, None] + p['beta'][None, :, None, None])
    out = jnp.maximum(out, 0.0)

    def head(w, b):
        return jax.lax.conv_general_dilated(
            out, w, (1, 1), 'VALID',
            dimension_numbers=('NCHW', 'OIHW', 'NCHW')) + b[None, :, None, None]

    return head(p['w_r'], p['b_r']), head(p['w_e'], p['b_e']), head(p['w_d'], p['b_d'])


if __name__ == "__main__":
    key = jax.random.PRNGKey(0)
    kx, kp = jax.random.split(key)

    N, C, H, W = 2, 8, 16, 16
    x = jax.random.normal(kx, (N, C, H, W), jnp.float32)

    raw = init_raw_params(kp, C)
    folded = fold_params(raw)

    outs = subdecoder_pallas(x, folded, pre_result=None)
    outs = jax.block_until_ready(outs)

    refs = reference_jax(x, raw)
    for o, r in zip(outs, refs):
        assert o.shape == (N, 1, H, W)
        # bf16 MXU operands (f32 accumulation) -> tolerance loosened vs pure-f32.
        err = float(jnp.max(jnp.abs(o - r)))
        assert err < 2.5e-2, err

    print("KERNEL_OK")
</pallas_src>

<mosaic_0001>
module attributes {stable_mosaic.version = 11 : i64} {
  func.func @_subdecoder_kernel(%arg0: i32, %arg1: memref<72x512xbf16, #tpu.memory_space<vmem>>, %arg2: memref<8x72xbf16, #tpu.memory_space<vmem>>, %arg3: memref<8x1xf32, #tpu.memory_space<vmem>>, %arg4: memref<3x8xbf16, #tpu.memory_space<vmem>>, %arg5: memref<3x1xf32, #tpu.memory_space<vmem>>, %arg6: memref<3x512xf32, #tpu.memory_space<vmem>>) attributes {dimension_semantics = [#tpu.dimension_semantics<arbitrary>], iteration_bounds = array<i64: 1>, scalar_prefetch = 0 : i64, scratch_operands = 0 : i64, tpu.core_type = #tpu.core_type<tc>, window_params = [{pipeline_mode = #tpu.pipeline_mode<synchronous>, transform_indices = @transform_0, window_bounds = array<i64: 72, 512>}, {pipeline_mode = #tpu.pipeline_mode<synchronous>, transform_indices = @transform_1, window_bounds = array<i64: 8, 72>}, {pipeline_mode = #tpu.pipeline_mode<synchronous>, transform_indices = @transform_2, window_bounds = array<i64: 8, 1>}, {pipeline_mode = #tpu.pipeline_mode<synchronous>, transform_indices = @transform_3, window_bounds = array<i64: 3, 8>}, {pipeline_mode = #tpu.pipeline_mode<synchronous>, transform_indices = @transform_4, window_bounds = array<i64: 3, 1>}, {pipeline_mode = #tpu.pipeline_mode<synchronous>, transform_indices = @transform_5, window_bounds = array<i64: 3, 512>}]} {
    %c0 = arith.constant 0 : index
    %c0_0 = arith.constant 0 : index
    %0 = vector.load %arg2[%c0, %c0_0] : memref<8x72xbf16, #tpu.memory_space<vmem>>, vector<8x72xbf16>
    %c0_1 = arith.constant 0 : index
    %c0_2 = arith.constant 0 : index
    %1 = vector.load %arg1[%c0_1, %c0_2] : memref<72x512xbf16, #tpu.memory_space<vmem>>, vector<72x512xbf16>
    %cst = arith.constant dense<0.000000e+00> : vector<8x512xf32>
    %2 = tpu.matmul %0, %1, %cst {dimension_numbers = #tpu.dot_dimension_numbers<[1], [0], [0], [1], [0, 0, 1, 1], [], []>} : vector<8x72xbf16>, vector<72x512xbf16>, vector<8x512xf32> -> vector<8x512xf32>
    %c0_3 = arith.constant 0 : index
    %c0_4 = arith.constant 0 : index
    %3 = vector.load %arg3[%c0_3, %c0_4] : memref<8x1xf32, #tpu.memory_space<vmem>>, vector<8x1xf32>
    %4 = vector.broadcast %3 : vector<8x1xf32> to vector<8x512xf32>
    %5 = arith.addf %2, %4 : vector<8x512xf32>
    %cst_5 = arith.constant 0.000000e+00 : f32
    %6 = vector.broadcast %cst_5 : f32 to vector<8x512xf32>
    %7 = arith.maximumf %5, %6 : vector<8x512xf32>
    %c0_6 = arith.constant 0 : index
    %c0_7 = arith.constant 0 : index
    %8 = vector.load %arg4[%c0_6, %c0_7] : memref<3x8xbf16, #tpu.memory_space<vmem>>, vector<3x8xbf16>
    %9 = arith.truncf %7 : vector<8x512xf32> to vector<8x512xbf16>
    %cst_8 = arith.constant dense<0.000000e+00> : vector<3x512xf32>
    %10 = tpu.matmul %8, %9, %cst_8 {dimension_numbers = #tpu.dot_dimension_numbers<[1], [0], [0], [1], [0, 0, 1, 1], [], []>} : vector<3x8xbf16>, vector<8x512xbf16>, vector<3x512xf32> -> vector<3x512xf32>
    %c0_9 = arith.constant 0 : index
    %c0_10 = arith.constant 0 : index
    %11 = vector.load %arg5[%c0_9, %c0_10] : memref<3x1xf32, #tpu.memory_space<vmem>>, vector<3x1xf32>
    %12 = vector.broadcast %11 : vector<3x1xf32> to vector<3x512xf32>
    %13 = arith.addf %10, %12 : vector<3x512xf32>
    %c0_11 = arith.constant 0 : index
    %c0_12 = arith.constant 0 : index
    %14 = vector.load %arg6[%c0_11, %c0_12] : memref<3x512xf32, #tpu.memory_space<vmem>>, vector<3x512xf32>
    tpu.vector_store %arg6[%c0_11, %c0_12], %13 {strides = array<i32>} : memref<3x512xf32, #tpu.memory_space<vmem>>, vector<3x512xf32>,
    return
  }
  func.func @transform_0(%arg0: i32) -> (i32, i32) {
    %c0_i32 = arith.constant 0 : i32
    %c0_i32_0 = arith.constant 0 : i32
    %c0_i32_1 = arith.constant 0 : i32
    return %c0_i32, %c0_i32_0 : i32, i32
  }
  func.func @transform_1(%arg0: i32) -> (i32, i32) {
    %c0_i32 = arith.constant 0 : i32
    %c0_i32_0 = arith.constant 0 : i32
    %c0_i32_1 = arith.constant 0 : i32
    return %c0_i32, %c0_i32_0 : i32, i32
  }
  func.func @transform_2(%arg0: i32) -> (i32, i32) {
    %c0_i32 = arith.constant 0 : i32
    %c0_i32_0 = arith.constant 0 : i32
    %c0_i32_1 = arith.constant 0 : i32
    return %c0_i32, %c0_i32_0 : i32, i32
  }
  func.func @transform_3(%arg0: i32) -> (i32, i32) {
    %c0_i32 = arith.constant 0 : i32
    %c0_i32_0 = arith.constant 0 : i32
    %c0_i32_1 = arith.constant 0 : i32
    return %c0_i32, %c0_i32_0 : i32, i32
  }
  func.func @transform_4(%arg0: i32) -> (i32, i32) {
    %c0_i32 = arith.constant 0 : i32
    %c0_i32_0 = arith.constant 0 : i32
    %c0_i32_1 = arith.constant 0 : i32
    return %c0_i32, %c0_i32_0 : i32, i32
  }
  func.func @transform_5(%arg0: i32) -> (i32, i32) {
    %c0_i32 = arith.constant 0 : i32
    %c0_i32_0 = arith.constant 0 : i32
    %c0_i32_1 = arith.constant 0 : i32
    return %c0_i32, %c0_i32_0 : i32, i32
  }
}

</mosaic_0001>

<llo_original>
// kernel: tpu_custom_call.1
$region0: #{tpu_custom_call.1}
  #allocation0 [shape = 'u32[]', space=smem, size = 0x4, offset = 0x4, fixed_abs, tag = 'smem constant byte address 0x4 - core index']
  #allocation1 [shape = 'u32[144,128]{1,0:T(1,128)}', space=vmem, size = 0x12000, scoped, tag = 'internal scratch']
  %s0 = inlined_call_operand.hbm [shape: bf16[72,512], index: 0, kind: input, shape index: {}]
  %s1 = inlined_call_operand.vmem [shape: bf16[8,72], index: 1, kind: input, shape index: {}]
  %s2 = inlined_call_operand.vmem [shape: f32[8,1], index: 2, kind: input, shape index: {}]
  %s3 = inlined_call_operand.vmem [shape: bf16[3,8], index: 3, kind: input, shape index: {}]
  %s4 = inlined_call_operand.vmem [shape: f32[3,1], index: 4, kind: input, shape index: {}]
  %s5 = inlined_call_operand.hbm [shape: f32[3,512], index: 5, kind: output, shape index: {}]
  %s6 = sld [smem:[#allocation0]]
  $region34: #{tpu_custom_call.1} parent=0
    _
  %s8 = ssub.s32 1, %s6
  %s9 = scalar_select 0, %s8, %s6
  $region1: #{tpu_custom_call.1} parent=0
    #allocation2 [shape = 'u8[73728]{0}', space=vmem, size = 0x12000, scoped, tag = 'input window, operand 0, single buffered']
    #allocation3 [shape = 's32[1]{0}', space=sflag, size = 0x4, scoped, tag = 'scoped memory for tpu_custom_call.1']
    #allocation4 [shape = 's32[1]{0}', space=sflag, size = 0x4, scoped, tag = 'scoped memory for tpu_custom_call.1']
    #allocation5 [shape = 'u8[8192]{0}', space=vmem, size = 0x2000, scoped, tag = 'output window, operand 0, single buffered']
    %10 = vsyncpa [#allocation3], 0
    %11 = vsyncpa [#allocation4], 0
    // Predicated region
    $region2: #{tpu_custom_call.1} parent=1 // pred_check
      _
    $region3: #{tpu_custom_call.1} parent=1 // pred_check_branch
      %13 = sbr.rel (0) target = $region5
    $region4: #{tpu_custom_call.1} parent=1 // pred_region
      %s15 = ssub.s32 2304, 2304
      %16 = vsyncadd [#allocation3], %s15
      %s17 = sshll.u32 [#allocation2], 4
      %s18 = int_to_ptr.vmem [resolvable:$true] %s17
      %23 = dma.hbm_to_vmem [thread:$0]  %s0, 2304, %s18, [#allocation3], 256, 256, 16
    $region5: #{tpu_custom_call.1} parent=1 // pred_fallthru
      _
    // Predicated region
    $region6: #{tpu_custom_call.1} parent=1 // pred_check
      _
    $region7: #{tpu_custom_call.1} parent=1 // pred_check_branch
      %25 = sbr.rel (0) target = $region9
    $region8: #{tpu_custom_call.1} parent=1 // pred_region
      _
    $region9: #{tpu_custom_call.1} parent=1 // pred_fallthru
      _
    // Predicated region
    $region10: #{tpu_custom_call.1} parent=1 // pred_check
      _
    $region11: #{tpu_custom_call.1} parent=1 // pred_check_branch
      %27 = sbr.rel (0) target = $region13
    $region12: #{tpu_custom_call.1} parent=1 // pred_region
      _
    $region13: #{tpu_custom_call.1} parent=1 // pred_fallthru
      _
    // Predicated region
    $region14: #{tpu_custom_call.1} parent=1 // pred_check
      _
    $region15: #{tpu_custom_call.1} parent=1 // pred_check_branch
      %29 = sbr.rel (0) target = $region17
    $region16: #{tpu_custom_call.1} parent=1 // pred_region
      _
    $region17: #{tpu_custom_call.1} parent=1 // pred_fallthru
      _
    // Predicated region
    $region18: #{tpu_custom_call.1} parent=1 // pred_check
      _
    $region19: #{tpu_custom_call.1} parent=1 // pred_check_branch
      %31 = sbr.rel (0) target = $region21
    $region20: #{tpu_custom_call.1} parent=1 // pred_region
      _
    $region21: #{tpu_custom_call.1} parent=1 // pred_fallthru
      _
    // Predicated region
    $region22: #{tpu_custom_call.1} parent=1 // pred_check
      _
    $region23: #{tpu_custom_call.1} parent=1 // pred_check_branch
      %33 = sbr.rel (0) target = $region25
    $region24: #{tpu_custom_call.1} parent=1 // pred_region
      %34 = dma.done [#allocation3], 2304
    $region25: #{tpu_custom_call.1} parent=1 // pred_fallthru
      _
    %v36 = vld [vmem:[%s1] sm:$0xf]
    %v37 = vld [vmem:[#allocation2] sm:$0xff]
    %v38 = vld [vmem:[#allocation2 + $0x8] sm:$0xff]
    %v39 = vld [vmem:[#allocation2 + $0x10] sm:$0xff]
    %v40 = vld [vmem:[#allocation2 + $0x18] sm:$0xff]
    %v41 = vld [vmem:[#allocation2 + $0x20] sm:$0xff]
    %v42 = vld [vmem:[#allocation2 + $0x28] sm:$0xff]
    %v43 = vld [vmem:[#allocation2 + $0x30] sm:$0xff]
    %v44 = vld [vmem:[#allocation2 + $0x38] sm:$0xff]
    %v45 = vld [vmem:[#allocation2 + $0x40] sm:$0xff]
    %v46 = vld [vmem:[#allocation2 + $0x48] sm:$0xff]
    %v47 = vld [vmem:[#allocation2 + $0x50] sm:$0xff]
    %v48 = vld [vmem:[#allocation2 + $0x58] sm:$0xff]
    %v49 = vld [vmem:[#allocation2 + $0x60] sm:$0xff]
    %v50 = vld [vmem:[#allocation2 + $0x68] sm:$0xff]
    %v51 = vld [vmem:[#allocation2 + $0x70] sm:$0xff]
    %v52 = vld [vmem:[#allocation2 + $0x78] sm:$0xff]
    %v53 = vld [vmem:[#allocation2 + $0x80] sm:$0xff]
    %v54 = vld [vmem:[#allocation2 + $0x88] sm:$0xff]
    %v55 = vld [vmem:[%s2] sm:$0xff]
    %57 = vset.pattern.permute.xlu0 0
    %58 = vperm.xlu0 %57, %v55
    %v59 = vpop.permute.xlu0 %58
    %v79 = vunpack.c.l.b16 %v37
    %v80 = vunpack.c.h.b16 %v37
    %v81 = vunpack.c.l.b16 %v38
    %v82 = vunpack.c.h.b16 %v38
    %v83 = vunpack.c.l.b16 %v39
    %v84 = vunpack.c.h.b16 %v39
    %v85 = vunpack.c.l.b16 %v40
    %v86 = vunpack.c.h.b16 %v40
    %v87 = vunpack.c.l.b16 %v41
    %v88 = vunpack.c.h.b16 %v41
    %v89 = vunpack.c.l.b16 %v42
    %v90 = vunpack.c.h.b16 %v42
    %v91 = vunpack.c.l.b16 %v43
    %v92 = vunpack.c.h.b16 %v43
    %v93 = vunpack.c.l.b16 %v44
    %v94 = vunpack.c.h.b16 %v44
    %v95 = vunpack.c.l.b16 %v45
    %v96 = vunpack.c.h.b16 %v45
    %v97 = vunpack.c.l.b16 %v46
    %v98 = vunpack.c.h.b16 %v46
    %v99 = vunpack.c.l.b16 %v47
    %v100 = vunpack.c.h.b16 %v47
    %v101 = vunpack.c.l.b16 %v48
    %v102 = vunpack.c.h.b16 %v48
    %v103 = vunpack.c.l.b16 %v49
    %v104 = vunpack.c.h.b16 %v49
    %v105 = vunpack.c.l.b16 %v50
    %v106 = vunpack.c.h.b16 %v50
    %v107 = vunpack.c.l.b16 %v51
    %v108 = vunpack.c.h.b16 %v51
    %v109 = vunpack.c.l.b16 %v52
    %v110 = vunpack.c.h.b16 %v52
    %v111 = vunpack.c.l.b16 %v53
    %v112 = vunpack.c.h.b16 %v53
    %v113 = vunpack.c.l.b16 %v54
    %v114 = vunpack.c.h.b16 %v54
    %v115 = vpack.c.b16 %v83, %v79
    %v116 = vpack.c.b16 %v84, %v80
    %v117 = vpack.c.b16 %v85, %v81
    %v118 = vpack.c.b16 %v86, %v82
    %v119 = vpack.c.b16 %v91, %v87
    %v120 = vpack.c.b16 %v92, %v88
    %v121 = vpack.c.b16 %v93, %v89
    %v122 = vpack.c.b16 %v94, %v90
    %v123 = vpack.c.b16 %v99, %v95
    %v124 = vpack.c.b16 %v100, %v96
    %v125 = vpack.c.b16 %v101, %v97
    %v126 = vpack.c.b16 %v102, %v98
    %v127 = vpack.c.b16 %v107, %v103
    %v128 = vpack.c.b16 %v108, %v104
    %v129 = vpack.c.b16 %v109, %v105
    %v130 = vpack.c.b16 %v110, %v106
    %v131 = vpack.c.b16 %v111, %v111
    %v132 = vpack.c.b16 %v112, %v112
    %v133 = vpack.c.b16 %v113, %v113
    %v134 = vpack.c.b16 %v114, %v114
    %vm151 = vcmask 588800
    %v153 = vsel %vm151, %v36, 0
    %vm155 = vcmask 1043456
    %v157 = vsel %vm155, %v131, 0
    %v160 = vsel %vm155, %v132, 0
    %v163 = vsel %vm155, %v133, 0
    %v166 = vsel %vm155, %v134, 0
    %168 = vmatprep.subr.bf16.mxu0 %v116
    %169 = vmatpush1.bf16.msra.mxu0 %v115
    %170 = vmatprep.subr.bf16.mxu0 %v120
    %171 = vmatpush1.bf16.msra.mxu0 %v119
    %172 = vmatprep.subr.bf16.mxu0 %v124
    %173 = vmatpush1.bf16.msra.mxu0 %v123
    %174 = vmatprep.subr.bf16.mxu0 %v128
    %175 = vmatpush1.bf16.msra.mxu0 %v127
    %176 = vmatprep.subr.bf16.mxu0 %v160
    %177 = vmatpush1.bf16.msra.mxu0 %v157
    %178 = vmatprep.subr.bf16.mxu0 0
    %179 = vmatpush1.bf16.msra.mxu0 0
    %180 = vmatprep.subr.bf16.mxu0 0
    %181 = vmatpush1.bf16.msra.mxu0 0
    %182 = vmatprep.subr.bf16.mxu0 0
    %183 = vmatpush1.bf16.msra.mxu0 0
    %184 = vmatprep.subr.bf16.mxu0 0
    %185 = vmatpush1.bf16.msra.mxu0 0
    %186 = vmatprep.subr.bf16.mxu0 0
    %187 = vmatpush1.bf16.msra.mxu0 0
    %188 = vmatprep.subr.bf16.mxu0 0
    %189 = vmatpush1.bf16.msra.mxu0 0
    %190 = vmatprep.subr.bf16.mxu0 0
    %191 = vmatpush1.bf16.msra.mxu0 0
    %192 = vmatprep.subr.bf16.mxu0 0
    %193 = vmatpush1.bf16.msra.mxu0 0
    %194 = vmatprep.subr.bf16.mxu0 0
    %195 = vmatpush1.bf16.msra.mxu0 0
    %196 = vmatprep.subr.bf16.mxu0 0
    %197 = vmatpush1.bf16.msra.mxu0 0
    %198 = vmatprep.subr.bf16.mxu0 0
    %199 = vmatpush1.bf16.msra.mxu0 0
    %200 = vmatprep.mubr.bf16.mxu0 0
    %201 = vmatmul.mubr.bf16.gmra.mrb[0].mxu0 %v153
    %v202 = vpop.f32.mrb[0].mxu0
    %v203 = vadd.f32 %v59, %v202
    %v204 = vpop.f32.mrb[0].mxu0
    %v205 = vadd.f32 %v59, %v204
    %v206 = vpop.f32.mrb[0].mxu0
    %v207 = vpop.f32.mrb[0].mxu0
    %208 = vdwg.mxu0
    %209 = vmatprep.subr.bf16.mxu0 %v118
    %210 = vmatpush1.bf16.msra.mxu0 %v117
    %211 = vmatprep.subr.bf16.mxu0 %v122
    %212 = vmatpush1.bf16.msra.mxu0 %v121
    %213 = vmatprep.subr.bf16.mxu0 %v126
    %214 = vmatpush1.bf16.msra.mxu0 %v125
    %215 = vmatprep.subr.bf16.mxu0 %v130
    %216 = vmatpush1.bf16.msra.mxu0 %v129
    %217 = vmatprep.subr.bf16.mxu0 %v166
    %218 = vmatpush1.bf16.msra.mxu0 %v163
    %219 = vmatprep.subr.bf16.mxu0 0
    %220 = vmatpush1.bf16.msra.mxu0 0
    %221 = vmatprep.subr.bf16.mxu0 0
    %222 = vmatpush1.bf16.msra.mxu0 0
    %223 = vmatprep.subr.bf16.mxu0 0
    %224 = vmatpush1.bf16.msra.mxu0 0
    %225 = vmatprep.subr.bf16.mxu0 0
    %226 = vmatpush1.bf16.msra.mxu0 0
    %227 = vmatprep.subr.bf16.mxu0 0
    %228 = vmatpush1.bf16.msra.mxu0 0
    %229 = vmatprep.subr.bf16.mxu0 0
    %230 = vmatpush1.bf16.msra.mxu0 0
    %231 = vmatprep.subr.bf16.mxu0 0
    %232 = vmatpush1.bf16.msra.mxu0 0
    %233 = vmatprep.subr.bf16.mxu0 0
    %234 = vmatpush1.bf16.msra.mxu0 0
    %235 = vmatprep.subr.bf16.mxu0 0
    %236 = vmatpush1.bf16.msra.mxu0 0
    %237 = vmatprep.subr.bf16.mxu0 0
    %238 = vmatpush1.bf16.msra.mxu0 0
    %239 = vmatprep.subr.bf16.mxu0 0
    %240 = vmatpush1.bf16.msra.mxu0 0
    %241 = vmatprep.mubr.bf16.mxu0 0
    %242 = vmatmul.mubr.bf16.gmra.mrb[0].mxu0 %v153
    %v243 = vpop.f32.mrb[0].mxu0
    %v244 = vadd.f32 %v59, %v243
    %v245 = vpop.f32.mrb[0].mxu0
    %v246 = vadd.f32 %v59, %v245
    %v247 = vpop.f32.mrb[0].mxu0
    %v248 = vpop.f32.mrb[0].mxu0
    %249 = vdwg.mxu0
    %v250 = vmax.f32 %v203, 0.0
    %v251 = vmax.f32 %v205, 0.0
    %v252 = vmax.f32 %v244, 0.0
    %v253 = vmax.f32 %v246, 0.0
    %v254 = vld [vmem:[%s3] sm:$0x3]
    %v255 = vpack.c.bf16 %v250, %v250
    %v256 = vpack.c.bf16 %v251, %v251
    %v257 = vpack.c.bf16 %v252, %v252
    %v258 = vpack.c.bf16 %v253, %v253
    %v259 = vld [vmem:[%s4] sm:$0x7]
    %261 = vset.pattern.permute.xlu0 0
    %262 = vperm.xlu0 %261, %v259
    %v263 = vpop.permute.xlu0 %262
    %vm265 = vcmask 64512
    %v267 = vsel %vm265, %v254, 0
    %v270 = vsel %vm155, %v255, 0
    %v273 = vsel %vm155, %v256, 0
    %v276 = vsel %vm155, %v257, 0
    %v279 = vsel %vm155, %v258, 0
    %281 = vmatprep.subr.bf16.mxu0 %v273
    %282 = vmatpush1.bf16.msra.mxu0 %v270
    %283 = vmatprep.subr.bf16.mxu0 0
    %284 = vmatpush1.bf16.msra.mxu0 0
    %285 = vmatprep.subr.bf16.mxu0 0
    %286 = vmatpush1.bf16.msra.mxu0 0
    %287 = vmatprep.subr.bf16.mxu0 0
    %288 = vmatpush1.bf16.msra.mxu0 0
    %289 = vmatprep.subr.bf16.mxu0 0
    %290 = vmatpush1.bf16.msra.mxu0 0
    %291 = vmatprep.subr.bf16.mxu0 0
    %292 = vmatpush1.bf16.msra.mxu0 0
    %293 = vmatprep.subr.bf16.mxu0 0
    %294 = vmatpush1.bf16.msra.mxu0 0
    %295 = vmatprep.subr.bf16.mxu0 0
    %296 = vmatpush1.bf16.msra.mxu0 0
    %297 = vmatprep.subr.bf16.mxu0 0
    %298 = vmatpush1.bf16.msra.mxu0 0
    %299 = vmatprep.subr.bf16.mxu0 0
    %300 = vmatpush1.bf16.msra.mxu0 0
    %301 = vmatprep.subr.bf16.mxu0 0
    %302 = vmatpush1.bf16.msra.mxu0 0
    %303 = vmatprep.subr.bf16.mxu0 0
    %304 = vmatpush1.bf16.msra.mxu0 0
    %305 = vmatprep.subr.bf16.mxu0 0
    %306 = vmatpush1.bf16.msra.mxu0 0
    %307 = vmatprep.subr.bf16.mxu0 0
    %308 = vmatpush1.bf16.msra.mxu0 0
    %309 = vmatprep.subr.bf16.mxu0 0
    %310 = vmatpush1.bf16.msra.mxu0 0
    %311 = vmatprep.subr.bf16.mxu0 0
    %312 = vmatpush1.bf16.msra.mxu0 0
    %313 = vmatprep.mubr.bf16.mxu0 0
    %314 = vmatmul.mubr.bf16.gmra.mrb[0].mxu0 %v267
    %v315 = vpop.f32.mrb[0].mxu0
    %v316 = vadd.f32 %v263, %v315
    %v317 = vpop.f32.mrb[0].mxu0
    %v318 = vadd.f32 %v263, %v317
    %v319 = vpop.f32.mrb[0].mxu0
    %v320 = vpop.f32.mrb[0].mxu0
    %321 = vdwg.mxu0
    %322 = vmatprep.subr.bf16.mxu0 %v279
    %323 = vmatpush1.bf16.msra.mxu0 %v276
    %324 = vmatprep.subr.bf16.mxu0 0
    %325 = vmatpush1.bf16.msra.mxu0 0
    %326 = vmatprep.subr.bf16.mxu0 0
    %327 = vmatpush1.bf16.msra.mxu0 0
    %328 = vmatprep.subr.bf16.mxu0 0
    %329 = vmatpush1.bf16.msra.mxu0 0
    %330 = vmatprep.subr.bf16.mxu0 0
    %331 = vmatpush1.bf16.msra.mxu0 0
    %332 = vmatprep.subr.bf16.mxu0 0
    %333 = vmatpush1.bf16.msra.mxu0 0
    %334 = vmatprep.subr.bf16.mxu0 0
    %335 = vmatpush1.bf16.msra.mxu0 0
    %336 = vmatprep.subr.bf16.mxu0 0
    %337 = vmatpush1.bf16.msra.mxu0 0
    %338 = vmatprep.subr.bf16.mxu0 0
    %339 = vmatpush1.bf16.msra.mxu0 0
    %340 = vmatprep.subr.bf16.mxu0 0
    %341 = vmatpush1.bf16.msra.mxu0 0
    %342 = vmatprep.subr.bf16.mxu0 0
    %343 = vmatpush1.bf16.msra.mxu0 0
    %344 = vmatprep.subr.bf16.mxu0 0
    %345 = vmatpush1.bf16.msra.mxu0 0
    %346 = vmatprep.subr.bf16.mxu0 0
    %347 = vmatpush1.bf16.msra.mxu0 0
    %348 = vmatprep.subr.bf16.mxu0 0
    %349 = vmatpush1.bf16.msra.mxu0 0
    %350 = vmatprep.subr.bf16.mxu0 0
    %351 = vmatpush1.bf16.msra.mxu0 0
    %352 = vmatprep.subr.bf16.mxu0 0
    %353 = vmatpush1.bf16.msra.mxu0 0
    %354 = vmatprep.mubr.bf16.mxu0 0
    %355 = vmatmul.mubr.bf16.gmra.mrb[0].mxu0 %v267
    %v356 = vpop.f32.mrb[0].mxu0
    %v357 = vadd.f32 %v263, %v356
    %v358 = vpop.f32.mrb[0].mxu0
    %v359 = vadd.f32 %v263, %v358
    %v360 = vpop.f32.mrb[0].mxu0
    %v361 = vpop.f32.mrb[0].mxu0
    %362 = vdwg.mxu0
    %v367 = vcombine.low %v316, %v318
    %v368 = vcombine.low %v357, %v359
    %371 = vst [vmem:[#allocation5] sm:$0x77] %v367
    %372 = vst [vmem:[#allocation5 + $0x8] sm:$0x77] %v368
    // Predicated region
    $region26: #{tpu_custom_call.1} parent=1 // pred_check
      _
    $region27: #{tpu_custom_call.1} parent=1 // pred_check_branch
      %374 = sbr.rel (0) target = $region29
    $region28: #{tpu_custom_call.1} parent=1 // pred_region
      %s376 = ssub.s32 256, 256
      %377 = vsyncadd [#allocation4], %s376
      %s379 = sshll.u32 [#allocation5], 4
      %s380 = int_to_ptr.vmem [resolvable:$true] %s379
      %382 = dma.vmem_to_hbm [thread:$0]  %s380, 256, %s5, [#allocation4]
    $region29: #{tpu_custom_call.1} parent=1 // pred_fallthru
      _
    // Predicated region
    $region30: #{tpu_custom_call.1} parent=1 // pred_check
      _
    $region31: #{tpu_custom_call.1} parent=1 // pred_check_branch
      %384 = sbr.rel (0) target = $region33
    $region32: #{tpu_custom_call.1} parent=1 // pred_region
      %385 = dma.done [#allocation4], 256
    $region33: #{tpu_custom_call.1} parent=1 // pred_fallthru
      _
    %386 = vsyncpa [#allocation3], 1
    %387 = vsyncpa [#allocation4], 1

</llo_original>
